<compile_context>
chip_gen: v7x
topology: tpu7x:2x2x1
jax: 0.10.0
libtpu: 0.0.40
codegen_flags: <defaults>
</compile_context>

<pallas_src>
import functools
import math

import jax
import jax.numpy as jnp
from jax import lax
from jax.experimental import pallas as pl
from jax.experimental.pallas import tpu as pltpu


def _mlp_kernel(x_ref, w1_ref, b1_ref, g_ref, beta_ref, w2_ref, b2_ref, o_ref):
    # All compute in f32 (MXU accumulates in f32; VPU/EUP math in f32).
    x = x_ref[...].astype(jnp.float32)                       # (tile_n, D)

    # Linear(d_model, d_model) on the MXU.
    h = jnp.dot(x, w1_ref[...], preferred_element_type=jnp.float32) + b1_ref[...]

    # LayerNorm over the last dim (eps=1e-5, biased variance, affine).
    # One-pass statistics: var = E[h^2] - mu^2  (halves the XLU reductions).
    mu = jnp.mean(h, axis=-1, keepdims=True)
    var = jnp.maximum(jnp.mean(h * h, axis=-1, keepdims=True) - mu * mu, 0.0)
    hn = (h - mu) * lax.rsqrt(var + 1e-5)
    hn = hn * g_ref[...] + beta_ref[...]

    # GELU (exact / erf form, matching torch.nn.GELU default).
    act = 0.5 * hn * (1.0 + lax.erf(hn * (1.0 / math.sqrt(2.0))))

    # Linear(d_model, 1): VPU multiply + lane reduction (width-1 MXU matmul
    # would waste >99% of the systolic array).  w2 is passed as a (1, D) row,
    # b2 as an SMEM scalar.
    out = jnp.sum(act * w2_ref[...], axis=-1) + b2_ref[0]     # (tile_n,)

    # Lane-dense store: o_ref block is (1, 1, tile_n).
    o_ref[...] = out.reshape(o_ref.shape).astype(o_ref.dtype)


def _pick_tile_n(N, D):
    """Row-tile size: as large as comfortably fits the smallest (v5e, 16 MiB)
    default scoped-VMEM budget next to the resident (D, D) weight, capped so
    the parallel grid axis keeps >= 2 steps (v7x megacore)."""
    budget = 6 * 1024 * 1024
    per_row = 5 * D * 4          # 2x double-buffered x rows + ~3 live f32 temps
    t = max(8, budget // per_row)
    t = min(512, t)              # 512 = multiple of both 128 (v5e) and 256 (v6e/v7x)
    t = min(t, -(-N // 2))       # allow >= 2 grid steps when N is small
    if t >= 128:
        t = (t // 128) * 128     # keep the output slab lane-dense
    else:
        t = max(8, (t // 8) * 8)
    return int(t)


@functools.partial(jax.jit, static_argnames=("tile_n",))
def mlp_after_cross_attn(x, w1, b1, gamma, beta, w2, b2, *, tile_n=None):
    """x: (B, S, D) -> (B, S, 1). Fused Linear -> LayerNorm -> GELU -> Linear."""
    B, S, D = x.shape
    N = B * S
    assert D % 128 == 0, "d_model must be a multiple of 128 for lane-dense tiles"

    if tile_n is None:
        tile_n = _pick_tile_n(N, D)

    num_tiles = -(-N // tile_n)
    n_pad = num_tiles * tile_n

    x2 = x.reshape(N, D)
    if n_pad != N:
        # Pad rows so the row grid divides evenly; padded rows are discarded.
        x2 = jnp.pad(x2, ((0, n_pad - N), (0, 0)))

    # Present 1-D params as (1, D) rows for VMEM tiles; b2 as an SMEM scalar.
    b1r = b1.reshape(1, D)
    gr = gamma.reshape(1, D)
    br = beta.reshape(1, D)
    w2r = w2.reshape(1, D)       # (D, 1) -> (1, D) row
    b2r = b2.reshape(1)

    out = pl.pallas_call(
        _mlp_kernel,
        out_shape=jax.ShapeDtypeStruct((num_tiles, 1, tile_n), x.dtype),
        grid_spec=pltpu.PrefetchScalarGridSpec(
            num_scalar_prefetch=0,
            grid=(num_tiles,),
            in_specs=[
                pl.BlockSpec((tile_n, D), lambda i: (i, 0)),   # x row tile
                pl.BlockSpec((D, D), lambda i: (0, 0)),        # W1 (resident)
                pl.BlockSpec((1, D), lambda i: (0, 0)),        # b1
                pl.BlockSpec((1, D), lambda i: (0, 0)),        # gamma
                pl.BlockSpec((1, D), lambda i: (0, 0)),        # beta
                pl.BlockSpec((1, D), lambda i: (0, 0)),        # w2 as a row
                pl.BlockSpec(memory_space=pltpu.MemorySpace.SMEM),  # b2 scalar
            ],
            # Lane-dense output slab: one (1, tile_n) row of lanes per step.
            out_specs=pl.BlockSpec((1, 1, tile_n), lambda i: (i, 0, 0)),
        ),
        compiler_params=pltpu.CompilerParams(
            dimension_semantics=("parallel",),
            vmem_limit_bytes=32 * 1024 * 1024,
        ),
    )(x2, w1, b1r, gr, br, w2r, b2r)

    out = out.reshape(n_pad)[:N]
    return out.reshape(B, S, 1)


def _reference(x, w1, b1, gamma, beta, w2, b2):
    h = jnp.einsum("bsd,de->bse", x, w1) + b1
    mu = jnp.mean(h, axis=-1, keepdims=True)
    var = jnp.mean((h - mu) ** 2, axis=-1, keepdims=True)
    hn = (h - mu) / jnp.sqrt(var + 1e-5) * gamma + beta
    act = 0.5 * hn * (1.0 + lax.erf(hn * (1.0 / math.sqrt(2.0))))
    return jnp.einsum("bsd,do->bso", act, w2) + b2


if __name__ == "__main__":
    # Small, deterministic synthetic setup.
    B, S, D = 2, 8, 128          # d_model = 128
    key = jax.random.PRNGKey(0)
    kx, kw1, kb1, kg, kbe, kw2, kb2 = jax.random.split(key, 7)

    x = jax.random.normal(kx, (B, S, D), dtype=jnp.float32)

    # Deterministic parameter init (shapes match nn.Linear / nn.LayerNorm).
    w1 = jax.random.normal(kw1, (D, D), dtype=jnp.float32) * (1.0 / math.sqrt(D))
    b1 = jax.random.normal(kb1, (D,), dtype=jnp.float32) * 0.01
    gamma = 1.0 + 0.1 * jax.random.normal(kg, (D,), dtype=jnp.float32)
    beta = 0.1 * jax.random.normal(kbe, (D,), dtype=jnp.float32)
    w2 = jax.random.normal(kw2, (D, 1), dtype=jnp.float32) * (1.0 / math.sqrt(D))
    b2 = jax.random.normal(kb2, (1,), dtype=jnp.float32) * 0.01

    out = jax.block_until_ready(mlp_after_cross_attn(x, w1, b1, gamma, beta, w2, b2))
    ref = _reference(x, w1, b1, gamma, beta, w2, b2)
    assert out.shape == (B, S, 1), out.shape
    assert jnp.allclose(out, ref, atol=2e-4, rtol=2e-4), \
        float(jnp.max(jnp.abs(out - ref)))

    # Larger run: exercises big row tiles, row padding, and a multi-step grid.
    B2, S2 = 4, 200              # N = 800 -> tile_n = 384, 3 tiles, padded to 1152
    x_big = jax.random.normal(jax.random.PRNGKey(1), (B2, S2, D), dtype=jnp.float32)
    out2 = jax.block_until_ready(mlp_after_cross_attn(x_big, w1, b1, gamma, beta, w2, b2))
    ref2 = _reference(x_big, w1, b1, gamma, beta, w2, b2)
    assert out2.shape == (B2, S2, 1), out2.shape
    assert jnp.allclose(out2, ref2, atol=2e-4, rtol=2e-4), \
        float(jnp.max(jnp.abs(out2 - ref2)))

    print("KERNEL_OK")
</pallas_src>

<mosaic_0001>
module attributes {stable_mosaic.version = 11 : i64} {
  func.func @_mlp_kernel(%arg0: i32, %arg1: memref<8x128xf32, #tpu.memory_space<vmem>>, %arg2: memref<128x128xf32, #tpu.memory_space<vmem>>, %arg3: memref<1x128xf32, #tpu.memory_space<vmem>>, %arg4: memref<1x128xf32, #tpu.memory_space<vmem>>, %arg5: memref<1x128xf32, #tpu.memory_space<vmem>>, %arg6: memref<1x128xf32, #tpu.memory_space<vmem>>, %arg7: memref<1xf32, #tpu.memory_space<smem>>, %arg8: memref<1x1x8xf32, #tpu.memory_space<vmem>>) attributes {dimension_semantics = [#tpu.dimension_semantics<parallel>], iteration_bounds = array<i64: 2>, scalar_prefetch = 0 : i64, scratch_operands = 0 : i64, tpu.core_type = #tpu.core_type<tc>, window_params = [{transform_indices = @transform_0, window_bounds = array<i64: 8, 128>}, {pipeline_mode = #tpu.pipeline_mode<synchronous>, transform_indices = @transform_1, window_bounds = array<i64: 128, 128>}, {pipeline_mode = #tpu.pipeline_mode<synchronous>, transform_indices = @transform_2, window_bounds = array<i64: 1, 128>}, {pipeline_mode = #tpu.pipeline_mode<synchronous>, transform_indices = @transform_3, window_bounds = array<i64: 1, 128>}, {pipeline_mode = #tpu.pipeline_mode<synchronous>, transform_indices = @transform_4, window_bounds = array<i64: 1, 128>}, {pipeline_mode = #tpu.pipeline_mode<synchronous>, transform_indices = @transform_5, window_bounds = array<i64: 1, 128>}, {transform_indices = @transform_6, window_bounds = array<i64: 1>}, {transform_indices = @transform_7, window_bounds = array<i64: 1, 1, 8>}]} {
    %c0 = arith.constant 0 : index
    %c0_0 = arith.constant 0 : index
    %0 = vector.load %arg1[%c0, %c0_0] : memref<8x128xf32, #tpu.memory_space<vmem>>, vector<8x128xf32>
    %c0_1 = arith.constant 0 : index
    %c0_2 = arith.constant 0 : index
    %1 = vector.load %arg2[%c0_1, %c0_2] : memref<128x128xf32, #tpu.memory_space<vmem>>, vector<128x128xf32>
    %cst = arith.constant dense<0.000000e+00> : vector<8x128xf32>
    %2 = tpu.matmul %0, %1, %cst {dimension_numbers = #tpu.dot_dimension_numbers<[1], [0], [0], [1], [0, 0, 1, 1], [], []>} : vector<8x128xf32>, vector<128x128xf32>, vector<8x128xf32> -> vector<8x128xf32>
    %c0_3 = arith.constant 0 : index
    %c0_4 = arith.constant 0 : index
    %3 = vector.load %arg3[%c0_3, %c0_4] : memref<1x128xf32, #tpu.memory_space<vmem>>, vector<1x128xf32>
    %4 = vector.broadcast %3 : vector<1x128xf32> to vector<8x128xf32>
    %5 = arith.addf %2, %4 : vector<8x128xf32>
    %cst_5 = arith.constant dense<0.000000e+00> : vector<8xf32>
    %6 = vector.multi_reduction <add>, %5, %cst_5 [1] : vector<8x128xf32> to vector<8xf32>
    %7 = vector.shape_cast %6 : vector<8xf32> to vector<8x1xf32>
    %cst_6 = arith.constant 1.280000e+02 : f32
    %8 = vector.broadcast %cst_6 : f32 to vector<8x1xf32>
    %9 = arith.divf %7, %8 : vector<8x1xf32>
    %10 = arith.mulf %5, %5 : vector<8x128xf32>
    %cst_7 = arith.constant dense<0.000000e+00> : vector<8xf32>
    %11 = vector.multi_reduction <add>, %10, %cst_7 [1] : vector<8x128xf32> to vector<8xf32>
    %12 = vector.shape_cast %11 : vector<8xf32> to vector<8x1xf32>
    %cst_8 = arith.constant 1.280000e+02 : f32
    %13 = vector.broadcast %cst_8 : f32 to vector<8x1xf32>
    %14 = arith.divf %12, %13 : vector<8x1xf32>
    %15 = arith.mulf %9, %9 : vector<8x1xf32>
    %16 = arith.subf %14, %15 : vector<8x1xf32>
    %cst_9 = arith.constant 0.000000e+00 : f32
    %17 = vector.broadcast %cst_9 : f32 to vector<8x1xf32>
    %18 = arith.maximumf %16, %17 : vector<8x1xf32>
    %19 = vector.broadcast %9 : vector<8x1xf32> to vector<8x128xf32>
    %20 = arith.subf %5, %19 : vector<8x128xf32>
    %cst_10 = arith.constant 9.99999974E-6 : f32
    %21 = vector.broadcast %cst_10 : f32 to vector<8x1xf32>
    %22 = arith.addf %18, %21 : vector<8x1xf32>
    %23 = math.rsqrt %22 : vector<8x1xf32>
    %24 = vector.broadcast %23 : vector<8x1xf32> to vector<8x128xf32>
    %25 = arith.mulf %20, %24 : vector<8x128xf32>
    %c0_11 = arith.constant 0 : index
    %c0_12 = arith.constant 0 : index
    %26 = vector.load %arg4[%c0_11, %c0_12] : memref<1x128xf32, #tpu.memory_space<vmem>>, vector<1x128xf32>
    %27 = vector.broadcast %26 : vector<1x128xf32> to vector<8x128xf32>
    %28 = arith.mulf %25, %27 : vector<8x128xf32>
    %c0_13 = arith.constant 0 : index
    %c0_14 = arith.constant 0 : index
    %29 = vector.load %arg5[%c0_13, %c0_14] : memref<1x128xf32, #tpu.memory_space<vmem>>, vector<1x128xf32>
    %30 = vector.broadcast %29 : vector<1x128xf32> to vector<8x128xf32>
    %31 = arith.addf %28, %30 : vector<8x128xf32>
    %cst_15 = arith.constant 5.000000e-01 : f32
    %32 = vector.broadcast %cst_15 : f32 to vector<8x128xf32>
    %33 = arith.mulf %32, %31 : vector<8x128xf32>
    %cst_16 = arith.constant 0.707106769 : f32
    %34 = vector.broadcast %cst_16 : f32 to vector<8x128xf32>
    %35 = arith.mulf %31, %34 : vector<8x128xf32>
    %36 = math.erf %35 : vector<8x128xf32>
    %cst_17 = arith.constant 1.000000e+00 : f32
    %37 = vector.broadcast %cst_17 : f32 to vector<8x128xf32>
    %38 = arith.addf %37, %36 : vector<8x128xf32>
    %39 = arith.mulf %33, %38 : vector<8x128xf32>
    %c0_18 = arith.constant 0 : index
    %c0_19 = arith.constant 0 : index
    %40 = vector.load %arg6[%c0_18, %c0_19] : memref<1x128xf32, #tpu.memory_space<vmem>>, vector<1x128xf32>
    %41 = vector.broadcast %40 : vector<1x128xf32> to vector<8x128xf32>
    %42 = arith.mulf %39, %41 : vector<8x128xf32>
    %cst_20 = arith.constant dense<0.000000e+00> : vector<8xf32>
    %43 = vector.multi_reduction <add>, %42, %cst_20 [1] : vector<8x128xf32> to vector<8xf32>
    %c0_21 = arith.constant 0 : index
    %44 = memref.load %arg7[%c0_21] : memref<1xf32, #tpu.memory_space<smem>>
    %45 = vector.broadcast %44 : f32 to vector<8xf32>
    %46 = arith.addf %43, %45 : vector<8xf32>
    %47 = vector.shape_cast %46 : vector<8xf32> to vector<1x1x8xf32>
    %c0_22 = arith.constant 0 : index
    %c0_23 = arith.constant 0 : index
    %c0_24 = arith.constant 0 : index
    %48 = vector.load %arg8[%c0_22, %c0_23, %c0_24] : memref<1x1x8xf32, #tpu.memory_space<vmem>>, vector<1x1x8xf32>
    tpu.vector_store %arg8[%c0_22, %c0_23, %c0_24], %47 {strides = array<i32>} : memref<1x1x8xf32, #tpu.memory_space<vmem>>, vector<1x1x8xf32>,
    return
  }
  func.func @transform_0(%arg0: i32) -> (i32, i32) {
    %c0_i32 = arith.constant 0 : i32
    %c0_i32_0 = arith.constant 0 : i32
    return %arg0, %c0_i32 : i32, i32
  }
  func.func @transform_1(%arg0: i32) -> (i32, i32) {
    %c0_i32 = arith.constant 0 : i32
    %c0_i32_0 = arith.constant 0 : i32
    %c0_i32_1 = arith.constant 0 : i32
    return %c0_i32, %c0_i32_0 : i32, i32
  }
  func.func @transform_2(%arg0: i32) -> (i32, i32) {
    %c0_i32 = arith.constant 0 : i32
    %c0_i32_0 = arith.constant 0 : i32
    %c0_i32_1 = arith.constant 0 : i32
    return %c0_i32, %c0_i32_0 : i32, i32
  }
  func.func @transform_3(%arg0: i32) -> (i32, i32) {
    %c0_i32 = arith.constant 0 : i32
    %c0_i32_0 = arith.constant 0 : i32
    %c0_i32_1 = arith.constant 0 : i32
    return %c0_i32, %c0_i32_0 : i32, i32
  }
  func.func @transform_4(%arg0: i32) -> (i32, i32) {
    %c0_i32 = arith.constant 0 : i32
    %c0_i32_0 = arith.constant 0 : i32
    %c0_i32_1 = arith.constant 0 : i32
    return %c0_i32, %c0_i32_0 : i32, i32
  }
  func.func @transform_5(%arg0: i32) -> (i32, i32) {
    %c0_i32 = arith.constant 0 : i32
    %c0_i32_0 = arith.constant 0 : i32
    %c0_i32_1 = arith.constant 0 : i32
    return %c0_i32, %c0_i32_0 : i32, i32
  }
  func.func @transform_6(%arg0: i32) -> i32 {
    %c0_i32 = arith.constant 0 : i32
    %c0_i32_0 = arith.constant 0 : i32
    return %c0_i32 : i32
  }
  func.func @transform_7(%arg0: i32) -> (i32, i32, i32) {
    %c0_i32 = arith.constant 0 : i32
    %c0_i32_0 = arith.constant 0 : i32
    %c0_i32_1 = arith.constant 0 : i32
    return %arg0, %c0_i32, %c0_i32_0 : i32, i32, i32
  }
}

</mosaic_0001>

<llo_original>
// kernel: mlp_after_cross_attn.1
$region0: #{mlp_after_cross_attn.1}
  #allocation0 [shape = 'u32[]', space=smem, size = 0x4, offset = 0x4, fixed_abs, tag = 'smem constant byte address 0x4 - core index']
  #allocation1 [shape = 'u32[144,128]{1,0:T(1,128)}', space=vmem, size = 0x12000, scoped, tag = 'internal scratch']
  #allocation2 [shape = 'f32[1]{0:T(128)S(6)}', space=smem, size = 0x200, scoped, tag = 'scoped memory for mlp_after_cross_attn.1']
  %s0 = inlined_call_operand.vmem [shape: f32[16,128], index: 0, kind: input, shape index: {}]
  %s1 = inlined_call_operand.hbm [shape: f32[128,128], index: 1, kind: input, shape index: {}]
  %s2 = inlined_call_operand.vmem [shape: f32[1,128], index: 2, kind: input, shape index: {}]
  %s3 = inlined_call_operand.vmem [shape: f32[1,128], index: 3, kind: input, shape index: {}]
  %s4 = inlined_call_operand.vmem [shape: f32[1,128], index: 4, kind: input, shape index: {}]
  %s5 = inlined_call_operand.vmem [shape: f32[1,128], index: 5, kind: input, shape index: {}]
  %s6 = inlined_call_operand.<no memory space> [shape: f32[1], index: 6, kind: input, shape index: {}]
  %s7 = inlined_call_operand.hbm [shape: f32[2,1,8], index: 7, kind: output, shape index: {}]
  %s8 = sld [smem:[#allocation0]]
  $region65: #{mlp_after_cross_attn.1} parent=0
    _
  %s10 = ssub.s32 1, %s8
  %s11 = scalar_select 0, %s10, %s8
  %12 = sst [smem:[#allocation2]] %s6
  $region1: #{mlp_after_cross_attn.1} parent=0
    #allocation3 [shape = 'u8[65536]{0}', space=vmem, size = 0x10000, scoped, tag = 'input window, operand 1, single buffered']
    #allocation4 [shape = 's32[2]{0}', space=sflag, size = 0x8, scoped, tag = 'scoped memory for mlp_after_cross_attn.1']
    #allocation5 [shape = 's32[2]{0}', space=sflag, size = 0x8, scoped, tag = 'scoped memory for mlp_after_cross_attn.1']
    #allocation6 [shape = 'u8[1024]{0}', space=vmem, size = 0x400, scoped, tag = 'output window, operand 0']
    %13 = vsyncpa [#allocation4], 0
    %14 = vsyncpa [#allocation5], 0
    %s15 = scalar_lea.sflag [#allocation5], 1
    %16 = vsyncpa %s15, 0
    loop: start=0, step=1, limit=4
    $region2: #{mlp_after_cross_attn.1} parent=1 // loop_pre_header
      _
    $region3: #{mlp_after_cross_attn.1} parent=1 // loop_header
      %s18 = sphi 0, %s22
      %p19 = scmp.ge.s32.totalorder %s18, 4
      %s28 = sphi 0, %s30
      %s31 = sphi 0, %s28
      %s32 = sphi 0, %s31
      %s48 = sphi 0, %s32
      %s52 = sphi 0, %s52
      %s54 = sphi 0, %s52
      %s55 = sphi 0, %s54
      %s69 = sphi 0, %s55
      %s73 = sphi 0, %s73
      %s75 = sphi 0, %s73
      %s76 = sphi 0, %s75
      %s90 = sphi 0, %s76
      %s94 = sphi 0, %s94
      %s96 = sphi 0, %s94
      %s97 = sphi 0, %s96
      %s111 = sphi 0, %s97
      %s115 = sphi 0, %s115
      %s117 = sphi 0, %s115
      %s118 = sphi 0, %s117
      %s132 = sphi 0, %s118
      %s136 = sphi 0, %s136
      %s138 = sphi 0, %s136
      %s139 = sphi 0, %s138
      %s153 = sphi 0, %s139
      %s157 = sphi 0, %s157
      %s159 = sphi 0, %s157
      %s160 = sphi 0, %s159
      %s174 = sphi 0, %s160
      %s180 = sphi 0, %s182
      %s183 = sphi 0, %s180
      %s184 = sphi 0, %s183
      %s200 = sphi 0, %s184
    $region4: #{mlp_after_cross_attn.1} parent=1 // loop_header_branch
      %21 = sbr.rel (%p19) target = $region8
    $region5: #{mlp_after_cross_attn.1} parent=1 // loop_body
      %s23 = ssub.s32 %s18, 1
      %s24 = ssub.s32 %s18, 2
      %s25 = sadd.s32 %s18, 1
      %s26 = ssub.s32 %s18, %s25
      %p27 = scmp.eq.s32.totalorder %s26, 0
      %s29 = sadd.s32 %s28, 1
      %s30 = scalar_select %p27, %s28, %s29
      %p33 = pneg %p27
      %p34 = scmp.eq.s32.totalorder %s18, 1
      %p35 = por %p33, %p34
      %p36 = scmp.ne.s32.totalorder %s28, %s31
      %p37 = scmp.eq.s32.totalorder %s18, 0
      %p38 = por %p36, %p37
      %p39 = scmp.ne.s32.totalorder %s28, %s31
      %p40 = scmp.eq.s32.totalorder %s23, 1
      %p41 = por %p39, %p40
      %p42 = scmp.ne.s32.totalorder %s31, %s32
      %p43 = scmp.eq.s32.totalorder %s23, 0
      %p44 = por %p42, %p43
      %p45 = scmp.ne.s32.totalorder %s31, %s32
      %p46 = scmp.eq.s32.totalorder %s24, 1
      %p47 = por %p45, %p46
      %p49 = scmp.ne.s32.totalorder %s32, %s48
      %p50 = scmp.eq.s32.totalorder %s24, 0
      %p51 = por %p49, %p50
      %s53 = sadd.s32 %s52, 1
      %p56 = scmp.eq.s32.totalorder %s18, 1
      %p57 = scmp.ne.s32.totalorder %s52, %s54
      %p58 = scmp.eq.s32.totalorder %s18, 0
      %p59 = por %p57, %p58
      %p60 = scmp.ne.s32.totalorder %s52, %s54
      %p61 = scmp.eq.s32.totalorder %s23, 1
      %p62 = por %p60, %p61
      %p63 = scmp.ne.s32.totalorder %s54, %s55
      %p64 = scmp.eq.s32.totalorder %s23, 0
      %p65 = por %p63, %p64
      %p66 = scmp.ne.s32.totalorder %s54, %s55
      %p67 = scmp.eq.s32.totalorder %s24, 1
      %p68 = por %p66, %p67
      %p70 = scmp.ne.s32.totalorder %s55, %s69
      %p71 = scmp.eq.s32.totalorder %s24, 0
      %p72 = por %p70, %p71
      %s74 = sadd.s32 %s73, 1
      %p77 = scmp.eq.s32.totalorder %s18, 1
      %p78 = scmp.ne.s32.totalorder %s73, %s75
      %p79 = scmp.eq.s32.totalorder %s18, 0
      %p80 = por %p78, %p79
      %p81 = scmp.ne.s32.totalorder %s73, %s75
      %p82 = scmp.eq.s32.totalorder %s23, 1
      %p83 = por %p81, %p82
      %p84 = scmp.ne.s32.totalorder %s75, %s76
      %p85 = scmp.eq.s32.totalorder %s23, 0
      %p86 = por %p84, %p85
      %p87 = scmp.ne.s32.totalorder %s75, %s76
      %p88 = scmp.eq.s32.totalorder %s24, 1
      %p89 = por %p87, %p88
      %p91 = scmp.ne.s32.totalorder %s76, %s90
      %p92 = scmp.eq.s32.totalorder %s24, 0
      %p93 = por %p91, %p92
      %s95 = sadd.s32 %s94, 1
      %p98 = scmp.eq.s32.totalorder %s18, 1
      %p99 = scmp.ne.s32.totalorder %s94, %s96
      %p100 = scmp.eq.s32.totalorder %s18, 0
      %p101 = por %p99, %p100
      %p102 = scmp.ne.s32.totalorder %s94, %s96
      %p103 = scmp.eq.s32.totalorder %s23, 1
      %p104 = por %p102, %p103
      %p105 = scmp.ne.s32.totalorder %s96, %s97
      %p106 = scmp.eq.s32.totalorder %s23, 0
      %p107 = por %p105, %p106
      %p108 = scmp.ne.s32.totalorder %s96, %s97
      %p109 = scmp.eq.s32.totalorder %s24, 1
      %p110 = por %p108, %p109
      %p112 = scmp.ne.s32.totalorder %s97, %s111
      %p113 = scmp.eq.s32.totalorder %s24, 0
      %p114 = por %p112, %p113
      %s116 = sadd.s32 %s115, 1
      %p119 = scmp.eq.s32.totalorder %s18, 1
      %p120 = scmp.ne.s32.totalorder %s115, %s117
      %p121 = scmp.eq.s32.totalorder %s18, 0
      %p122 = por %p120, %p121
      %p123 = scmp.ne.s32.totalorder %s115, %s117
      %p124 = scmp.eq.s32.totalorder %s23, 1
      %p125 = por %p123, %p124
      %p126 = scmp.ne.s32.totalorder %s117, %s118
      %p127 = scmp.eq.s32.totalorder %s23, 0
      %p128 = por %p126, %p127
      %p129 = scmp.ne.s32.totalorder %s117, %s118
      %p130 = scmp.eq.s32.totalorder %s24, 1
      %p131 = por %p129, %p130
      %p133 = scmp.ne.s32.totalorder %s118, %s132
      %p134 = scmp.eq.s32.totalorder %s24, 0
      %p135 = por %p133, %p134
      %s137 = sadd.s32 %s136, 1
      %p140 = scmp.eq.s32.totalorder %s18, 1
      %p141 = scmp.ne.s32.totalorder %s136, %s138
      %p142 = scmp.eq.s32.totalorder %s18, 0
      %p143 = por %p141, %p142
      %p144 = scmp.ne.s32.totalorder %s136, %s138
      %p145 = scmp.eq.s32.totalorder %s23, 1
      %p146 = por %p144, %p145
      %p147 = scmp.ne.s32.totalorder %s138, %s139
      %p148 = scmp.eq.s32.totalorder %s23, 0
      %p149 = por %p147, %p148
      %p150 = scmp.ne.s32.totalorder %s138, %s139
      %p151 = scmp.eq.s32.totalorder %s24, 1
      %p152 = por %p150, %p151
      %p154 = scmp.ne.s32.totalorder %s139, %s153
      %p155 = scmp.eq.s32.totalorder %s24, 0
      %p156 = por %p154, %p155
      %s158 = sadd.s32 %s157, 1
      %p161 = scmp.eq.s32.totalorder %s18, 1
      %p162 = scmp.ne.s32.totalorder %s157, %s159
      %p163 = scmp.eq.s32.totalorder %s18, 0
      %p164 = por %p162, %p163
      %p165 = scmp.ne.s32.totalorder %s157, %s159
      %p166 = scmp.eq.s32.totalorder %s23, 1
      %p167 = por %p165, %p166
      %p168 = scmp.ne.s32.totalorder %s159, %s160
      %p169 = scmp.eq.s32.totalorder %s23, 0
      %p170 = por %p168, %p169
      %p171 = scmp.ne.s32.totalorder %s159, %s160
      %p172 = scmp.eq.s32.totalorder %s24, 1
      %p173 = por %p171, %p172
      %p175 = scmp.ne.s32.totalorder %s160, %s174
      %p176 = scmp.eq.s32.totalorder %s24, 0
      %p177 = por %p175, %p176
      %s178 = ssub.s32 %s18, %s25
      %p179 = scmp.eq.s32.totalorder %s178, 0
      %s181 = sadd.s32 %s180, 1
      %s182 = scalar_select %p179, %s180, %s181
      %p185 = pneg %p179
      %p186 = scmp.eq.s32.totalorder %s18, 1
      %p187 = por %p185, %p186
      %p188 = scmp.ne.s32.totalorder %s180, %s183
      %p189 = scmp.eq.s32.totalorder %s18, 0
      %p190 = por %p188, %p189
      %p191 = scmp.ne.s32.totalorder %s180, %s183
      %p192 = scmp.eq.s32.totalorder %s23, 1
      %p193 = por %p191, %p192
      %p194 = scmp.ne.s32.totalorder %s183, %s184
      %p195 = scmp.eq.s32.totalorder %s23, 0
      %p196 = por %p194, %p195
      %p197 = scmp.ne.s32.totalorder %s183, %s184
      %p198 = scmp.eq.s32.totalorder %s24, 1
      %p199 = por %p197, %p198
      %p201 = scmp.ne.s32.totalorder %s184, %s200
      %p202 = scmp.eq.s32.totalorder %s24, 0
      %p203 = por %p201, %p202
      %p204 = scmp.le.s32.totalorder 1, %s18
      %p205 = scmp.lt.s32.totalorder %s18, 3
      %p206 = pnand %p204, %p205
      %p207 = pneg %p206
      // Predicated region
      $region9: #{mlp_after_cross_attn.1} parent=5 // pred_check
        _
      $region10: #{mlp_after_cross_attn.1} parent=5 // pred_check_branch
        %209 = sbr.rel (%p206) target = $region12
      $region11: #{mlp_after_cross_attn.1} parent=5 // pred_region
        %s210 = ssub.s32 %s18, 1
        // Predicated region
        $region13: #{mlp_after_cross_attn.1} parent=11 // pred_check
          %p211 = pneg %p65
        $region14: #{mlp_after_cross_attn.1} parent=11 // pred_check_branch
          %213 = sbr.rel (%p211) target = $region16
        $region15: #{mlp_after_cross_attn.1} parent=11 // pred_region
          %s215 = ssub.s32 2048, 2048
          %216 = vsyncadd [#allocation4], %s215
          %s217 = sshll.u32 [#allocation3], 4
          %s218 = int_to_ptr.vmem [resolvable:$true] %s217
          %223 = dma.hbm_to_vmem [thread:$0]  %s1, 2048, %s218, [#allocation4], 128, 128, 8
        $region16: #{mlp_after_cross_attn.1} parent=11 // pred_fallthru
          _
        // Predicated region
        $region17: #{mlp_after_cross_attn.1} parent=11 // pred_check
          %p224 = pneg %p86
        $region18: #{mlp_after_cross_attn.1} parent=11 // pred_check_branch
          %226 = sbr.rel (%p224) target = $region20
        $region19: #{mlp_after_cross_attn.1} parent=11 // pred_region
          _
        $region20: #{mlp_after_cross_attn.1} parent=11 // pred_fallthru
          _
        // Predicated region
        $region21: #{mlp_after_cross_attn.1} parent=11 // pred_check
          %p227 = pneg %p107
        $region22: #{mlp_after_cross_attn.1} parent=11 // pred_check_branch
          %229 = sbr.rel (%p227) target = $region24
        $region23: #{mlp_after_cross_attn.1} parent=11 // pred_region
          _
        $region24: #{mlp_after_cross_attn.1} parent=11 // pred_fallthru
          _
        // Predicated region
        $region25: #{mlp_after_cross_attn.1} parent=11 // pred_check
          %p230 = pneg %p128
        $region26: #{mlp_after_cross_attn.1} parent=11 // pred_check_branch
          %232 = sbr.rel (%p230) target = $region28
        $region27: #{mlp_after_cross_attn.1} parent=11 // pred_region
          _
        $region28: #{mlp_after_cross_attn.1} parent=11 // pred_fallthru
          _
        // Predicated region
        $region29: #{mlp_after_cross_attn.1} parent=11 // pred_check
          %p233 = pneg %p149
        $region30: #{mlp_after_cross_attn.1} parent=11 // pred_check_branch
          %235 = sbr.rel (%p233) target = $region32
        $region31: #{mlp_after_cross_attn.1} parent=11 // pred_region
          _
        $region32: #{mlp_after_cross_attn.1} parent=11 // pred_fallthru
          _
        // Predicated region
        $region33: #{mlp_after_cross_attn.1} parent=11 // pred_check
          %p236 = pneg %p170
        $region34: #{mlp_after_cross_attn.1} parent=11 // pred_check_branch
          %238 = sbr.rel (%p236) target = $region36
        $region35: #{mlp_after_cross_attn.1} parent=11 // pred_region
          _
        $region36: #{mlp_after_cross_attn.1} parent=11 // pred_fallthru
          _
      $region12: #{mlp_after_cross_attn.1} parent=5 // pred_fallthru
        _
      %p239 = scmp.lt.s32.totalorder %s18, 2
      // Predicated region
      $region37: #{mlp_after_cross_attn.1} parent=5 // pred_check
        %p240 = pneg %p239
      $region38: #{mlp_after_cross_attn.1} parent=5 // pred_check_branch
        %242 = sbr.rel (%p240) target = $region40
      $region39: #{mlp_after_cross_attn.1} parent=5 // pred_region
        // Predicated region
        $region41: #{mlp_after_cross_attn.1} parent=39 // pred_check
          %p243 = pneg %p38
        $region42: #{mlp_after_cross_attn.1} parent=39 // pred_check_branch
          %245 = sbr.rel (%p243) target = $region44
        $region43: #{mlp_after_cross_attn.1} parent=39 // pred_region
          %p246 = scmp.lt.s32.totalorder %s18, 1
          %s247 = scalar_select %p246, %s18, 1
          %s248 = smul.addr %s247, 8
          %s249 = scalar_lea.vmem %s0, %s248
        $region44: #{mlp_after_cross_attn.1} parent=39 // pred_fallthru
          _
      $region40: #{mlp_after_cross_attn.1} parent=5 // pred_fallthru
        _
      %p250 = scmp.le.s32.totalorder 1, %s18
      %p251 = scmp.lt.s32.totalorder %s18, 3
      %p252 = pnand %p250, %p251
      %p253 = pneg %p252
      // Predicated region
      $region45: #{mlp_after_cross_attn.1} parent=5 // pred_check
        _
      $region46: #{mlp_after_cross_attn.1} parent=5 // pred_check_branch
        %255 = sbr.rel (%p252) target = $region48
      $region47: #{mlp_after_cross_attn.1} parent=5 // pred_region
        %s256 = ssub.s32 %s18, 1
        // Predicated region
        $region49: #{mlp_after_cross_attn.1} parent=47 // pred_check
          %p257 = pneg %p65
        $region50: #{mlp_after_cross_attn.1} parent=47 // pred_check_branch
          %259 = sbr.rel (%p257) target = $region52
        $region51: #{mlp_after_cross_attn.1} parent=47 // pred_region
          %260 = dma.done [#allocation4], 2048
        $region52: #{mlp_after_cross_attn.1} parent=47 // pred_fallthru
          _
        %p261 = scmp.lt.s32.totalorder %s23, 1
        %s262 = scalar_select %p261, %s23, 1
        %s263 = smul.addr %s262, 8
        %s264 = scalar_lea.vmem %s0, %s263
        %p265 = pneg %p44
        %p266 = pneg %p41
        %p267 = pneg %p65
        %p268 = pneg %p62
        %p269 = pneg %p86
        %p270 = pneg %p83
        %p271 = pneg %p107
        %p272 = pneg %p104
        %p273 = pneg %p128
        %p274 = pneg %p125
        %p275 = pneg %p149
        %p276 = pneg %p146
        %p277 = pneg %p170
        %p278 = pneg %p167
        %p279 = pneg %p196
        %p280 = pneg %p193
        %s281 = sand.u32 %s183, 1
        %s282 = scalar_lea.sflag [#allocation5], %s281
        %s283 = sand.u32 %s183, 1
        %s284 = scalar_lea.vmem [#allocation6], %s283
        %p285 = scmp.lt.s32.totalorder %s23, 1
        %s286 = scalar_select %p285, %s23, 1
        %s287 = smul.addr %s286, 8
        %s288 = scalar_lea.vmem %s0, %s287
        %v289 = vld [vmem:[%s288] sm:$0xff]
        %v290 = vld [vmem:[#allocation3] sm:$0xff]
        %v291 = vld [vmem:[#allocation3 + $0x8] sm:$0xff]
        %v292 = vld [vmem:[#allocation3 + $0x10] sm:$0xff]
        %v293 = vld [vmem:[#allocation3 + $0x18] sm:$0xff]
        %v294 = vld [vmem:[#allocation3 + $0x20] sm:$0xff]
        %v295 = vld [vmem:[#allocation3 + $0x28] sm:$0xff]
        %v296 = vld [vmem:[#allocation3 + $0x30] sm:$0xff]
        %v297 = vld [vmem:[#allocation3 + $0x38] sm:$0xff]
        %v298 = vld [vmem:[#allocation3 + $0x40] sm:$0xff]
        %v299 = vld [vmem:[#allocation3 + $0x48] sm:$0xff]
        %v300 = vld [vmem:[#allocation3 + $0x50] sm:$0xff]
        %v301 = vld [vmem:[#allocation3 + $0x58] sm:$0xff]
        %v302 = vld [vmem:[#allocation3 + $0x60] sm:$0xff]
        %v303 = vld [vmem:[#allocation3 + $0x68] sm:$0xff]
        %v304 = vld [vmem:[#allocation3 + $0x70] sm:$0xff]
        %v305 = vld [vmem:[#allocation3 + $0x78] sm:$0xff]
        %v306 = vld [vmem:[%s2] sm:$0x1]
        %v308 = vlaneseq
        %v309 = vshrl.u32 %v308, 7
        %v310 = vsub.s32 0, %v309
        %v311 = vrot.slane %v306, %v310
        %313 = vmatprep.subr.mxu0 0.0
        %314 = vmatpush1.msra.mxu0 %v290
        %315 = vmatprep.subr.mxu0 0.0
        %316 = vmatpush1.msra.mxu0 %v291
        %317 = vmatprep.subr.mxu0 0.0
        %318 = vmatpush1.msra.mxu0 %v292
        %319 = vmatprep.subr.mxu0 0.0
        %320 = vmatpush1.msra.mxu0 %v293
        %321 = vmatprep.subr.mxu0 0.0
        %322 = vmatpush1.msra.mxu0 %v294
        %323 = vmatprep.subr.mxu0 0.0
        %324 = vmatpush1.msra.mxu0 %v295
        %325 = vmatprep.subr.mxu0 0.0
        %326 = vmatpush1.msra.mxu0 %v296
        %327 = vmatprep.subr.mxu0 0.0
        %328 = vmatpush1.msra.mxu0 %v297
        %329 = vmatprep.subr.mxu0 0.0
        %330 = vmatpush1.msra.mxu0 %v298
        %331 = vmatprep.subr.mxu0 0.0
        %332 = vmatpush1.msra.mxu0 %v299
        %333 = vmatprep.subr.mxu0 0.0
        %334 = vmatpush1.msra.mxu0 %v300
        %335 = vmatprep.subr.mxu0 0.0
        %336 = vmatpush1.msra.mxu0 %v301
        %337 = vmatprep.subr.mxu0 0.0
        %338 = vmatpush1.msra.mxu0 %v302
        %339 = vmatprep.subr.mxu0 0.0
        %340 = vmatpush1.msra.mxu0 %v303
        %341 = vmatprep.subr.mxu0 0.0
        %342 = vmatpush1.msra.mxu0 %v304
        %343 = vmatprep.subr.mxu0 0.0
        %344 = vmatpush1.msra.mxu0 %v305
        %345 = vmatprep.subr.mxu0 0.0
        %346 = vmatpush1.msra.mxu0 0.0
        %347 = vmatprep.subr.mxu0 0.0
        %348 = vmatpush1.msra.mxu0 0.0
        %349 = vmatprep.subr.mxu0 0.0
        %350 = vmatpush1.msra.mxu0 0.0
        %351 = vmatprep.subr.mxu0 0.0
        %352 = vmatpush1.msra.mxu0 0.0
        %353 = vmatprep.subr.mxu0 0.0
        %354 = vmatpush1.msra.mxu0 0.0
        %355 = vmatprep.subr.mxu0 0.0
        %356 = vmatpush1.msra.mxu0 0.0
        %357 = vmatprep.subr.mxu0 0.0
        %358 = vmatpush1.msra.mxu0 0.0
        %359 = vmatprep.subr.mxu0 0.0
        %360 = vmatpush1.msra.mxu0 0.0
        %361 = vmatprep.subr.mxu0 0.0
        %362 = vmatpush1.msra.mxu0 0.0
        %363 = vmatprep.subr.mxu0 0.0
        %364 = vmatpush1.msra.mxu0 0.0
        %365 = vmatprep.subr.mxu0 0.0
        %366 = vmatpush1.msra.mxu0 0.0
        %367 = vmatprep.subr.mxu0 0.0
        %368 = vmatpush1.msra.mxu0 0.0
        %369 = vmatprep.subr.mxu0 0.0
        %370 = vmatpush1.msra.mxu0 0.0
        %371 = vmatprep.subr.mxu0 0.0
        %372 = vmatpush1.msra.mxu0 0.0
        %373 = vmatprep.subr.mxu0 0.0
        %374 = vmatpush1.msra.mxu0 0.0
        %375 = vmatprep.subr.mxu0 0.0
        %376 = vmatpush1.msra.mxu0 0.0
        %377 = vmatprep.mubr.f32.mxu0 0.0
        %378 = vmatmul.mubr.f32.gmra.mrb[0].mxu0 %v289
        %v379 = vpop.f32.mrb[0].mxu0
        %v380 = vadd.f32 %v311, %v379
        %v381 = vpop.f32.mrb[0].mxu0
        %382 = vdwg.mxu0
        %383 = vadd.xlane.f32.xlu0 %v380
        %v384 = vpop.xlane.xlu0 %383
        %v385 = vrcp.pop 128.0
        %v386 = vmul.f32 %v384, %v385
        %v387 = vmul.f32 %v380, %v380
        %388 = vadd.xlane.f32.xlu0 %v387
        %v389 = vpop.xlane.xlu0 %388
        %v390 = vmul.f32 %v389, %v385
        %v391 = vmul.f32 %v386, %v386
        %v392 = vsub.f32 %v390, %v391
        %v393 = vmax.f32 %v392, 0.0
        %v394 = vsub.f32 %v380, %v386
        %v395 = vadd.f32 %v393, 1e-05
        %v396 = vrsqrt.pop %v395
        %v397 = vmul.f32 %v394, %v396
        %v398 = vld [vmem:[%s3] sm:$0x1]
        %v400 = vlaneseq
        %v401 = vshrl.u32 %v400, 7
        %v402 = vsub.s32 0, %v401
        %v403 = vrot.slane %v398, %v402
        %v405 = vmul.f32 %v397, %v403
        %v406 = vld [vmem:[%s4] sm:$0x1]
        %v408 = vlaneseq
        %v409 = vshrl.u32 %v408, 7
        %v410 = vsub.s32 0, %v409
        %v411 = vrot.slane %v406, %v410
        %v413 = vadd.f32 %v405, %v411
        %v414 = vmul.f32 %v413, 0.5
        %v415 = vmul.f32 %v413, 0.70710677
        %v416 = verf.f32.pop %v415
        %v417 = vadd.f32 %v416, 1.0
        %v418 = vmul.f32 %v414, %v417
        %v419 = vld [vmem:[%s5] sm:$0x1]
        %v421 = vlaneseq
        %v422 = vshrl.u32 %v421, 7
        %v423 = vsub.s32 0, %v422
        %v424 = vrot.slane %v419, %v423
        %v426 = vmul.f32 %v418, %v424
        %427 = vadd.xlane.f32.xlu0 %v426
        %v428 = vpop.xlane.xlu0 %427
        %s429 = sld [smem:[#allocation2]]
        %v430 = vstv %s429
        %v431 = vadd.f32 %v428, %v430
        %v433 = vlaneseq
        %v434 = vand.u32 %v433, 127
        %v435 = vlaneseq
        %v436 = vshrl.u32 %v435, 7
        %v437 = vsub.s32 %v434, %v436
        %v438 = vrot.slane %v431, %v437
        %vm440 = vcmask 57344
        %441 = vst.msk [vmem:[%s284] sm:$0x1] %vm440, %v438
        %s442 = sand.u32 %s183, 1
        %s443 = scalar_lea.sflag [#allocation5], %s442
        %s444 = sand.u32 %s183, 1
        %s445 = scalar_lea.vmem [#allocation6], %s444
        // Predicated region
        $region53: #{mlp_after_cross_attn.1} parent=47 // pred_check
          %p446 = pneg %p193
        $region54: #{mlp_after_cross_attn.1} parent=47 // pred_check_branch
          %448 = sbr.rel (%p446) target = $region56
        $region55: #{mlp_after_cross_attn.1} parent=47 // pred_region
          %s450 = ssub.s32 16, 16
          %451 = vsyncadd %s443, %s450
          %s452 = smul.addr %s23, 16
          %s453 = scalar_lea.hbm %s7, %s452
          %s455 = sshll.u32 %s445, 4
          %s456 = int_to_ptr.vmem [resolvable:$true] %s455
          %458 = dma.vmem_to_hbm [thread:$0]  %s456, 16, %s453, %s443
        $region56: #{mlp_after_cross_attn.1} parent=47 // pred_fallthru
          _
      $region48: #{mlp_after_cross_attn.1} parent=5 // pred_fallthru
        _
      %p459 = scmp.le.s32.totalorder 2, %s18
      // Predicated region
      $region57: #{mlp_after_cross_attn.1} parent=5 // pred_check
        %p460 = pneg %p459
      $region58: #{mlp_after_cross_attn.1} parent=5 // pred_check_branch
        %462 = sbr.rel (%p460) target = $region60
      $region59: #{mlp_after_cross_attn.1} parent=5 // pred_region
        %s463 = ssub.s32 %s18, 2
        // Predicated region
        $region61: #{mlp_after_cross_attn.1} parent=59 // pred_check
          %p464 = pneg %p199
        $region62: #{mlp_after_cross_attn.1} parent=59 // pred_check_branch
          %466 = sbr.rel (%p464) target = $region64
        $region63: #{mlp_after_cross_attn.1} parent=59 // pred_region
          %s467 = sand.u32 %s184, 1
          %s468 = scalar_lea.sflag [#allocation5], %s467
          %s469 = sand.u32 %s184, 1
          %s470 = scalar_lea.vmem [#allocation6], %s469
          %471 = dma.done %s468, 16
        $region64: #{mlp_after_cross_attn.1} parent=59 // pred_fallthru
          _
      $region60: #{mlp_after_cross_attn.1} parent=5 // pred_fallthru
        _
    $region6: #{mlp_after_cross_attn.1} parent=1 // loop_footer
      %s22 = sadd.s32 1, %s18
    $region7: #{mlp_after_cross_attn.1} parent=1 // loop_footer_branch
      %17 = sbr.rel target = $region3
    $region8: #{mlp_after_cross_attn.1} parent=1 // loop_exit
      _
    %472 = vsyncpa [#allocation4], 1
    %s473 = scalar_lea.sflag [#allocation4], 1
    %474 = vsyncpa %s473, 1
    %475 = vsyncpa [#allocation5], 1
    %s476 = scalar_lea.sflag [#allocation5], 1
    %477 = vsyncpa %s476, 1

</llo_original>
